<compile_context>
chip_gen: v7x
topology: tpu7x:2x2x1
jax: 0.10.0
libtpu: 0.0.40
codegen_flags: <defaults>
</compile_context>

<pallas_src>
import functools

import jax
import jax.numpy as jnp
from jax.experimental import pallas as pl
from jax.experimental.pallas import tpu as pltpu


def _round_up(x, m):
    return ((x + m - 1) // m) * m


def _flows_kernel(n_flows, l_pad, z_ref, h_ref, w_ref, b_ref, z_out_ref, x_scr):
    """One grid step = one flow. Grid = (batch_tile, flow); flow is innermost.

    z is carried across flow steps in the revisited output block, x (the input of the
    next Linear) in the VMEM scratch. Padded lanes/rows of W & b are zero, so padded
    lanes of v are exactly 0 and contribute nothing to vTz / |v|^2.
    """
    i = pl.program_id(1)  # flow index

    @pl.when(i == 0)
    def _():
        # Fresh batch tile: seed the carried state.
        x_scr[...] = h_ref[...].astype(x_scr.dtype)
        z_out_ref[...] = z_ref[...].astype(z_out_ref.dtype)

    w = w_ref[0]                       # (D_max, L_pad)
    b = b_ref[0]                       # (1, L_pad)
    x = x_scr[...]                     # (Bt, D_max)

    # v = Linear_i(x)  (MXU matmul, f32 accumulate) + bias broadcast.
    v = jnp.dot(x.astype(w.dtype), w, preferred_element_type=jnp.float32)
    v = v + b.astype(jnp.float32)

    # Householder update as a rank-1 projection: z <- z - v * (2 (v.z) / |v|^2).
    z = z_out_ref[...]
    vTz = jnp.sum(v * z, axis=1, keepdims=True)        # (Bt, 1)
    norm_sq = jnp.sum(v * v, axis=1, keepdims=True)    # (Bt, 1)
    scale = (2.0 * vTz) * pl.reciprocal(norm_sq, approx=False)
    z_out_ref[...] = z - v * scale

    @pl.when(i < n_flows - 1)
    def _():
        # Next flow consumes v. Rows of W beyond l_pad are zero, so any stale lanes of
        # x_scr past l_pad contribute nothing and need no re-zeroing.
        x_scr[:, :l_pad] = v.astype(x_scr.dtype)


def _vmem_limit_bytes(bt, d_max, l_pad, w_itemsize):
    w_tile = d_max * l_pad * w_itemsize            # one weight block
    bias_tile = 8 * l_pad * 4                      # (1, L_pad) padded to 8 sublanes
    io_tiles = bt * l_pad * 4 * 2 + bt * d_max * 4  # z_in + z_out + h blocks
    scratch = bt * d_max * 4
    need = 2 * (w_tile + bias_tile + io_tiles) + scratch  # x2 for double buffering
    # Headroom, but stay inside v7x's 64 MiB physical VMEM.
    return int(min(max(need * 3 // 2, 16 * 1024 * 1024), 64 * 1024 * 1024))


@jax.jit
def _forward(z, h, w_stack, b_stack):
    """Run the whole flow chain in one pallas_call. All shape logic is trace-time static."""
    B, L = z.shape
    n_flows, d_max, l_pad = w_stack.shape

    # Batch tile: sublane-aligned, capped at the MXU height (256 on v6e/v7x; also fine on v5e).
    bt = min(_round_up(B, 8), 256)
    b_pad = _round_up(B, bt)
    n_btiles = b_pad // bt

    # Pad once, inside this jit (fused with the kernel dispatch). Zero padding is inert:
    # zero W rows/cols + zero bias lanes keep padded v lanes at exactly 0.
    z_pad = jnp.pad(z.astype(jnp.float32), ((0, b_pad - B), (0, l_pad - L)))
    h_pad = jnp.pad(h.astype(jnp.float32), ((0, b_pad - B), (0, d_max - h.shape[1])))

    kernel = functools.partial(_flows_kernel, n_flows, l_pad)

    # TODO(synk): for very large L (weight tile alone > ~32 MiB) add K/N tiling of the
    # matmul with an f32 accumulator scratch instead of a single (D_max, L_pad) block.
    out = pl.pallas_call(
        kernel,
        out_shape=jax.ShapeDtypeStruct((b_pad, l_pad), jnp.float32),
        grid_spec=pltpu.PrefetchScalarGridSpec(
            num_scalar_prefetch=0,
            grid=(n_btiles, n_flows),
            in_specs=[
                pl.BlockSpec((bt, l_pad), lambda bi, fi: (bi, 0)),        # z
                pl.BlockSpec((bt, d_max), lambda bi, fi: (bi, 0)),        # h (padded to D_max)
                pl.BlockSpec((1, d_max, l_pad), lambda bi, fi: (fi, 0, 0)),  # stacked weights
                pl.BlockSpec((1, 1, l_pad), lambda bi, fi: (fi, 0, 0)),      # stacked biases
            ],
            out_specs=pl.BlockSpec((bt, l_pad), lambda bi, fi: (bi, 0)),
            scratch_shapes=[pltpu.VMEM((bt, d_max), jnp.float32)],       # carried x
        ),
        compiler_params=pltpu.CompilerParams(
            dimension_semantics=("parallel", "arbitrary"),
            vmem_limit_bytes=_vmem_limit_bytes(bt, d_max, l_pad, w_stack.dtype.itemsize),
        ),
        input_output_aliases={0: 0},  # z_out reuses the padded-z buffer (fresh temp in-jit)
    )(z_pad, h_pad, w_stack, b_stack)

    return out[:B, :L]


class VolumePreservingFlows:
    """JAX/Pallas port of the PyTorch VolumePreservingFlows module."""

    H_DIM = 300  # PyTorch module's first Linear input size

    def __init__(self, in_features, n_flows=1, key=None, weight_dtype=jnp.float32):
        self.in_features = in_features
        self.n_flows = n_flows
        self.L = in_features
        self.L_pad = _round_up(max(in_features, 1), 128)          # lane-dense latent
        self.D_max = max(_round_up(self.H_DIM, 128), self.L_pad)  # common contraction pad

        if key is None:
            key = jax.random.PRNGKey(0)

        # Raw (unpadded) params used by the pure-JAX reference:
        #   weight (Din, L) == PyTorch (L, Din) transposed; bias (1, L).
        self.weights = []
        self.biases = []

        # Stacked, padded params used by the kernel (one-time host cost).
        w_stack = jnp.zeros((n_flows, self.D_max, self.L_pad), jnp.float32)
        b_stack = jnp.zeros((n_flows, 1, self.L_pad), jnp.float32)

        din = self.H_DIM
        for i in range(n_flows):
            key, wk, bk = jax.random.split(key, 3)
            bound = 1.0 / float(jnp.sqrt(float(din)))  # nn.Linear default init range
            w = jax.random.uniform(wk, (din, in_features), jnp.float32, -bound, bound)
            b = jax.random.uniform(bk, (1, in_features), jnp.float32, -bound, bound)
            self.weights.append(w)
            self.biases.append(b)

            w_stack = w_stack.at[i, :din, :in_features].set(w)
            b_stack = b_stack.at[i, :, :in_features].set(b)
            din = in_features

        # Optional bf16 fast path for weight streaming (flagged; f32 default keeps the
        # 1e-4 reference tolerance). Biases stay f32 (tiny, added post-MXU).
        self.w_stack = w_stack.astype(weight_dtype)
        self.b_stack = b_stack

    def __call__(self, z, h):
        return _forward(z, h, self.w_stack, self.b_stack)


def _reference(z, h, weights, biases):
    """Pure-JAX reference mirroring the PyTorch forward exactly."""
    x = h
    for w, b in zip(weights, biases):
        v = x @ w + b
        vTz = jnp.sum(v * z, axis=1, keepdims=True)
        norm_sq = jnp.sum(v * v, axis=1, keepdims=True)
        z = z - 2.0 * v * vTz / norm_sq
        x = v
    return z


if __name__ == "__main__":
    B = 2          # batch
    L = 32         # in_features (latent size)
    N_FLOWS = 2

    key = jax.random.PRNGKey(0)
    kz, kh, kp = jax.random.split(key, 3)
    z = jax.random.normal(kz, (B, L), jnp.float32)
    h = jax.random.normal(kh, (B, 300), jnp.float32)

    model = VolumePreservingFlows(in_features=L, n_flows=N_FLOWS, key=kp)

    out = jax.block_until_ready(model(z, h))

    ref = _reference(z, h, model.weights, model.biases)
    assert out.shape == (B, L)
    assert jnp.allclose(out, ref, atol=1e-4, rtol=1e-4), "mismatch vs reference"

    print("KERNEL_OK")
</pallas_src>

<mosaic_0001>
module attributes {stable_mosaic.version = 11 : i64} {
  func.func @_flows_kernel(%arg0: i32, %arg1: i32, %arg2: memref<8x128xf32, #tpu.memory_space<vmem>>, %arg3: memref<8x384xf32, #tpu.memory_space<vmem>>, %arg4: memref<1x384x128xf32, #tpu.memory_space<vmem>>, %arg5: memref<1x1x128xf32, #tpu.memory_space<vmem>>, %arg6: memref<8x128xf32, #tpu.memory_space<vmem>>, %arg7: memref<8x384xf32, #tpu.memory_space<vmem>>) attributes {dimension_semantics = [#tpu.dimension_semantics<parallel>, #tpu.dimension_semantics<arbitrary>], iteration_bounds = array<i64: 1, 2>, scalar_prefetch = 0 : i64, scratch_operands = 1 : i64, tpu.core_type = #tpu.core_type<tc>, window_params = [{transform_indices = @transform_0, window_bounds = array<i64: 8, 128>}, {transform_indices = @transform_1, window_bounds = array<i64: 8, 384>}, {transform_indices = @transform_2, window_bounds = array<i64: 1, 384, 128>}, {transform_indices = @transform_3, window_bounds = array<i64: 1, 1, 128>}, {transform_indices = @transform_4, window_bounds = array<i64: 8, 128>}]} {
    %c0_i32 = arith.constant 0 : i32
    %0 = arith.cmpi eq, %arg1, %c0_i32 : i32
    %1 = arith.extui %0 : i1 to i32
    %c0_i32_0 = arith.constant 0 : i32
    %2 = arith.cmpi ne, %1, %c0_i32_0 : i32
    scf.if %2 {
      %c0_16 = arith.constant 0 : index
      %c0_17 = arith.constant 0 : index
      %29 = vector.load %arg3[%c0_16, %c0_17] : memref<8x384xf32, #tpu.memory_space<vmem>>, vector<8x384xf32>
      %c0_18 = arith.constant 0 : index
      %c0_19 = arith.constant 0 : index
      %30 = vector.load %arg7[%c0_18, %c0_19] : memref<8x384xf32, #tpu.memory_space<vmem>>, vector<8x384xf32>
      tpu.vector_store %arg7[%c0_18, %c0_19], %29 {strides = array<i32>} : memref<8x384xf32, #tpu.memory_space<vmem>>, vector<8x384xf32>,
      %c0_20 = arith.constant 0 : index
      %c0_21 = arith.constant 0 : index
      %31 = vector.load %arg2[%c0_20, %c0_21] : memref<8x128xf32, #tpu.memory_space<vmem>>, vector<8x128xf32>
      %c0_22 = arith.constant 0 : index
      %c0_23 = arith.constant 0 : index
      %32 = vector.load %arg6[%c0_22, %c0_23] : memref<8x128xf32, #tpu.memory_space<vmem>>, vector<8x128xf32>
      tpu.vector_store %arg6[%c0_22, %c0_23], %31 {strides = array<i32>} : memref<8x128xf32, #tpu.memory_space<vmem>>, vector<8x128xf32>,
    } else {
    }
    %c0 = arith.constant 0 : index
    %c0_1 = arith.constant 0 : index
    %c0_2 = arith.constant 0 : index
    %3 = vector.load %arg4[%c0, %c0_1, %c0_2] : memref<1x384x128xf32, #tpu.memory_space<vmem>>, vector<1x384x128xf32>
    %4 = vector.shape_cast %3 : vector<1x384x128xf32> to vector<384x128xf32>
    %c0_3 = arith.constant 0 : index
    %c0_4 = arith.constant 0 : index
    %c0_5 = arith.constant 0 : index
    %5 = vector.load %arg5[%c0_3, %c0_4, %c0_5] : memref<1x1x128xf32, #tpu.memory_space<vmem>>, vector<1x1x128xf32>
    %6 = vector.shape_cast %5 : vector<1x1x128xf32> to vector<1x128xf32>
    %c0_6 = arith.constant 0 : index
    %c0_7 = arith.constant 0 : index
    %7 = vector.load %arg7[%c0_6, %c0_7] : memref<8x384xf32, #tpu.memory_space<vmem>>, vector<8x384xf32>
    %cst = arith.constant dense<0.000000e+00> : vector<8x128xf32>
    %8 = tpu.matmul %7, %4, %cst {dimension_numbers = #tpu.dot_dimension_numbers<[1], [0], [0], [1], [0, 0, 1, 1], [], []>} : vector<8x384xf32>, vector<384x128xf32>, vector<8x128xf32> -> vector<8x128xf32>
    %9 = vector.broadcast %6 : vector<1x128xf32> to vector<8x128xf32>
    %10 = arith.addf %8, %9 : vector<8x128xf32>
    %c0_8 = arith.constant 0 : index
    %c0_9 = arith.constant 0 : index
    %11 = vector.load %arg6[%c0_8, %c0_9] : memref<8x128xf32, #tpu.memory_space<vmem>>, vector<8x128xf32>
    %12 = arith.mulf %10, %11 : vector<8x128xf32>
    %cst_10 = arith.constant dense<0.000000e+00> : vector<8xf32>
    %13 = vector.multi_reduction <add>, %12, %cst_10 [1] : vector<8x128xf32> to vector<8xf32>
    %14 = vector.shape_cast %13 : vector<8xf32> to vector<8x1xf32>
    %15 = arith.mulf %10, %10 : vector<8x128xf32>
    %cst_11 = arith.constant dense<0.000000e+00> : vector<8xf32>
    %16 = vector.multi_reduction <add>, %15, %cst_11 [1] : vector<8x128xf32> to vector<8xf32>
    %17 = vector.shape_cast %16 : vector<8xf32> to vector<8x1xf32>
    %cst_12 = arith.constant 2.000000e+00 : f32
    %18 = vector.broadcast %cst_12 : f32 to vector<8x1xf32>
    %19 = arith.mulf %18, %14 : vector<8x1xf32>
    %20 = tpu.reciprocal %17 : vector<8x1xf32> -> vector<8x1xf32>
    %21 = arith.mulf %19, %20 : vector<8x1xf32>
    %22 = vector.broadcast %21 : vector<8x1xf32> to vector<8x128xf32>
    %23 = arith.mulf %10, %22 : vector<8x128xf32>
    %24 = arith.subf %11, %23 : vector<8x128xf32>
    %c0_13 = arith.constant 0 : index
    %c0_14 = arith.constant 0 : index
    %25 = vector.load %arg6[%c0_13, %c0_14] : memref<8x128xf32, #tpu.memory_space<vmem>>, vector<8x128xf32>
    tpu.vector_store %arg6[%c0_13, %c0_14], %24 {strides = array<i32>} : memref<8x128xf32, #tpu.memory_space<vmem>>, vector<8x128xf32>,
    %c1_i32 = arith.constant 1 : i32
    %26 = arith.cmpi slt, %arg1, %c1_i32 : i32
    %27 = arith.extui %26 : i1 to i32
    %c0_i32_15 = arith.constant 0 : i32
    %28 = arith.cmpi ne, %27, %c0_i32_15 : i32
    scf.if %28 {
      %c0_16 = arith.constant 0 : index
      %c0_17 = arith.constant 0 : index
      %29 = vector.load %arg7[%c0_16, %c0_17] : memref<8x384xf32, #tpu.memory_space<vmem>>, vector<8x128xf32>
      tpu.vector_store %arg7[%c0_16, %c0_17], %10 {strides = array<i32>} : memref<8x384xf32, #tpu.memory_space<vmem>>, vector<8x128xf32>,
    } else {
    }
    return
  }
  func.func @transform_0(%arg0: i32, %arg1: i32) -> (i32, i32) {
    %c0_i32 = arith.constant 0 : i32
    %c0_i32_0 = arith.constant 0 : i32
    return %arg0, %c0_i32 : i32, i32
  }
  func.func @transform_1(%arg0: i32, %arg1: i32) -> (i32, i32) {
    %c0_i32 = arith.constant 0 : i32
    %c0_i32_0 = arith.constant 0 : i32
    return %arg0, %c0_i32 : i32, i32
  }
  func.func @transform_2(%arg0: i32, %arg1: i32) -> (i32, i32, i32) {
    %c0_i32 = arith.constant 0 : i32
    %c0_i32_0 = arith.constant 0 : i32
    %c0_i32_1 = arith.constant 0 : i32
    return %arg1, %c0_i32, %c0_i32_0 : i32, i32, i32
  }
  func.func @transform_3(%arg0: i32, %arg1: i32) -> (i32, i32, i32) {
    %c0_i32 = arith.constant 0 : i32
    %c0_i32_0 = arith.constant 0 : i32
    %c0_i32_1 = arith.constant 0 : i32
    return %arg1, %c0_i32, %c0_i32_0 : i32, i32, i32
  }
  func.func @transform_4(%arg0: i32, %arg1: i32) -> (i32, i32) {
    %c0_i32 = arith.constant 0 : i32
    %c0_i32_0 = arith.constant 0 : i32
    return %arg0, %c0_i32 : i32, i32
  }
}

</mosaic_0001>

<llo_original>
// kernel: _forward.1
$region0: #{_forward.1}
  #allocation0 [shape = 'u32[]', space=smem, size = 0x4, offset = 0x4, fixed_abs, tag = 'smem constant byte address 0x4 - core index']
  #allocation1 [shape = 'u32[144,128]{1,0:T(1,128)}', space=vmem, size = 0x12000, scoped, tag = 'internal scratch']
  #allocation2 [shape = 'f32[8,384]{1,0:T(8,128)}', space=vmem, size = 0x3000, scoped, tag = 'scratch operand']
  %s0 = inlined_call_operand.vmem [shape: f32[8,128], index: 0, kind: input, shape index: {}, may-alias: {0,4}]
  %s1 = inlined_call_operand.vmem [shape: f32[8,384], index: 1, kind: input, shape index: {}]
  %s2 = inlined_call_operand.hbm [shape: f32[2,384,128], index: 2, kind: input, shape index: {}]
  %s3 = inlined_call_operand.vmem [shape: f32[2,1,128], index: 3, kind: input, shape index: {}]
  %s4 = inlined_call_operand.vmem [shape: f32[8,128], index: 4, kind: output, shape index: {}, may-alias: {0,4}]
  %s5 = sld [smem:[#allocation0]]
  $region61: #{_forward.1} parent=0
    _
  %s7 = ssub.s32 1, %s5
  %s8 = scalar_select 0, %s7, %s5
  $region1: #{_forward.1} parent=0
    #allocation3 [shape = 'u8[393216]{0}', space=vmem, size = 0x60000, scoped, tag = 'input window, operand 2']
    #allocation4 [shape = 's32[2]{0}', space=sflag, size = 0x8, scoped, tag = 'scoped memory for _forward.1']
    %9 = vsyncpa [#allocation4], 0
    %s10 = scalar_lea.sflag [#allocation4], 1
    %11 = vsyncpa %s10, 0
    loop: start=0, step=1, limit=4
    $region2: #{_forward.1} parent=1 // loop_pre_header
      _
    $region3: #{_forward.1} parent=1 // loop_header
      %s13 = sphi 0, %s17
      %p14 = scmp.ge.s32.totalorder %s13, 4
      %s20 = sphi 0, %s32
      %s21 = sphi 0, %s28
      %s22 = sphi 0, %s20
      %s23 = sphi 0, %s21
      %s24 = sphi 0, %s22
      %s25 = sphi 0, %s23
      %s35 = sphi 0, %s37
      %s38 = sphi 0, %s35
      %s39 = sphi 0, %s38
      %s55 = sphi 0, %s39
      %s61 = sphi 0, %s63
      %s64 = sphi 0, %s61
      %s65 = sphi 0, %s64
      %s81 = sphi 0, %s65
      %s87 = sphi 0, %s89
      %s90 = sphi 0, %s87
      %s91 = sphi 0, %s90
      %s107 = sphi 0, %s91
      %s113 = sphi 0, %s115
      %s116 = sphi 0, %s113
      %s117 = sphi 0, %s116
      %s133 = sphi 0, %s117
      %s139 = sphi 0, %s141
      %s142 = sphi 0, %s139
      %s143 = sphi 0, %s142
      %s159 = sphi 0, %s143
    $region4: #{_forward.1} parent=1 // loop_header_branch
      %16 = sbr.rel (%p14) target = $region8
    $region5: #{_forward.1} parent=1 // loop_body
      %s18 = ssub.s32 %s13, 1
      %s19 = ssub.s32 %s13, 2
      %s26 = sadd.s32 1, %s21
      %p27 = scmp.ge.s32.totalorder %s26, 2
      %s28 = scalar_select %p27, 0, %s26
      %s29 = sadd.s32 1, %s20
      %s30 = scalar_select %p27, %s29, %s20
      %p31 = scmp.ge.s32.totalorder %s30, 1
      %s32 = scalar_select %p31, 0, %s30
      %s33 = ssub.s32 %s20, %s32
      %p34 = scmp.eq.s32.totalorder %s33, 0
      %s36 = sadd.s32 %s35, 1
      %s37 = scalar_select %p34, %s35, %s36
      %p40 = pneg %p34
      %p41 = scmp.eq.s32.totalorder %s13, 1
      %p42 = por %p40, %p41
      %p43 = scmp.ne.s32.totalorder %s35, %s38
      %p44 = scmp.eq.s32.totalorder %s13, 0
      %p45 = por %p43, %p44
      %p46 = scmp.ne.s32.totalorder %s35, %s38
      %p47 = scmp.eq.s32.totalorder %s18, 1
      %p48 = por %p46, %p47
      %p49 = scmp.ne.s32.totalorder %s38, %s39
      %p50 = scmp.eq.s32.totalorder %s18, 0
      %p51 = por %p49, %p50
      %p52 = scmp.ne.s32.totalorder %s38, %s39
      %p53 = scmp.eq.s32.totalorder %s19, 1
      %p54 = por %p52, %p53
      %p56 = scmp.ne.s32.totalorder %s39, %s55
      %p57 = scmp.eq.s32.totalorder %s19, 0
      %p58 = por %p56, %p57
      %s59 = ssub.s32 %s20, %s32
      %p60 = scmp.eq.s32.totalorder %s59, 0
      %s62 = sadd.s32 %s61, 1
      %s63 = scalar_select %p60, %s61, %s62
      %p66 = pneg %p60
      %p67 = scmp.eq.s32.totalorder %s13, 1
      %p68 = por %p66, %p67
      %p69 = scmp.ne.s32.totalorder %s61, %s64
      %p70 = scmp.eq.s32.totalorder %s13, 0
      %p71 = por %p69, %p70
      %p72 = scmp.ne.s32.totalorder %s61, %s64
      %p73 = scmp.eq.s32.totalorder %s18, 1
      %p74 = por %p72, %p73
      %p75 = scmp.ne.s32.totalorder %s64, %s65
      %p76 = scmp.eq.s32.totalorder %s18, 0
      %p77 = por %p75, %p76
      %p78 = scmp.ne.s32.totalorder %s64, %s65
      %p79 = scmp.eq.s32.totalorder %s19, 1
      %p80 = por %p78, %p79
      %p82 = scmp.ne.s32.totalorder %s65, %s81
      %p83 = scmp.eq.s32.totalorder %s19, 0
      %p84 = por %p82, %p83
      %s85 = ssub.s32 %s21, %s28
      %p86 = scmp.eq.s32.totalorder %s85, 0
      %s88 = sadd.s32 %s87, 1
      %s89 = scalar_select %p86, %s87, %s88
      %p92 = pneg %p86
      %p93 = scmp.eq.s32.totalorder %s13, 1
      %p94 = por %p92, %p93
      %p95 = scmp.ne.s32.totalorder %s87, %s90
      %p96 = scmp.eq.s32.totalorder %s13, 0
      %p97 = por %p95, %p96
      %p98 = scmp.ne.s32.totalorder %s87, %s90
      %p99 = scmp.eq.s32.totalorder %s18, 1
      %p100 = por %p98, %p99
      %p101 = scmp.ne.s32.totalorder %s90, %s91
      %p102 = scmp.eq.s32.totalorder %s18, 0
      %p103 = por %p101, %p102
      %p104 = scmp.ne.s32.totalorder %s90, %s91
      %p105 = scmp.eq.s32.totalorder %s19, 1
      %p106 = por %p104, %p105
      %p108 = scmp.ne.s32.totalorder %s91, %s107
      %p109 = scmp.eq.s32.totalorder %s19, 0
      %p110 = por %p108, %p109
      %s111 = ssub.s32 %s21, %s28
      %p112 = scmp.eq.s32.totalorder %s111, 0
      %s114 = sadd.s32 %s113, 1
      %s115 = scalar_select %p112, %s113, %s114
      %p118 = pneg %p112
      %p119 = scmp.eq.s32.totalorder %s13, 1
      %p120 = por %p118, %p119
      %p121 = scmp.ne.s32.totalorder %s113, %s116
      %p122 = scmp.eq.s32.totalorder %s13, 0
      %p123 = por %p121, %p122
      %p124 = scmp.ne.s32.totalorder %s113, %s116
      %p125 = scmp.eq.s32.totalorder %s18, 1
      %p126 = por %p124, %p125
      %p127 = scmp.ne.s32.totalorder %s116, %s117
      %p128 = scmp.eq.s32.totalorder %s18, 0
      %p129 = por %p127, %p128
      %p130 = scmp.ne.s32.totalorder %s116, %s117
      %p131 = scmp.eq.s32.totalorder %s19, 1
      %p132 = por %p130, %p131
      %p134 = scmp.ne.s32.totalorder %s117, %s133
      %p135 = scmp.eq.s32.totalorder %s19, 0
      %p136 = por %p134, %p135
      %s137 = ssub.s32 %s20, %s32
      %p138 = scmp.eq.s32.totalorder %s137, 0
      %s140 = sadd.s32 %s139, 1
      %s141 = scalar_select %p138, %s139, %s140
      %p144 = pneg %p138
      %p145 = scmp.eq.s32.totalorder %s13, 1
      %p146 = por %p144, %p145
      %p147 = scmp.ne.s32.totalorder %s139, %s142
      %p148 = scmp.eq.s32.totalorder %s13, 0
      %p149 = por %p147, %p148
      %p150 = scmp.ne.s32.totalorder %s139, %s142
      %p151 = scmp.eq.s32.totalorder %s18, 1
      %p152 = por %p150, %p151
      %p153 = scmp.ne.s32.totalorder %s142, %s143
      %p154 = scmp.eq.s32.totalorder %s18, 0
      %p155 = por %p153, %p154
      %p156 = scmp.ne.s32.totalorder %s142, %s143
      %p157 = scmp.eq.s32.totalorder %s19, 1
      %p158 = por %p156, %p157
      %p160 = scmp.ne.s32.totalorder %s143, %s159
      %p161 = scmp.eq.s32.totalorder %s19, 0
      %p162 = por %p160, %p161
      %p163 = scmp.le.s32.totalorder 1, %s13
      %p164 = scmp.lt.s32.totalorder %s13, 3
      %p165 = pnand %p163, %p164
      %p166 = pneg %p165
      // Predicated region
      $region9: #{_forward.1} parent=5 // pred_check
        _
      $region10: #{_forward.1} parent=5 // pred_check_branch
        %168 = sbr.rel (%p165) target = $region12
      $region11: #{_forward.1} parent=5 // pred_region
        %s169 = ssub.s32 %s13, 1
        // Predicated region
        $region13: #{_forward.1} parent=11 // pred_check
          %p170 = pneg %p51
        $region14: #{_forward.1} parent=11 // pred_check_branch
          %172 = sbr.rel (%p170) target = $region16
        $region15: #{_forward.1} parent=11 // pred_region
          %p173 = scmp.lt.s32.totalorder %s22, 0
          %s174 = scalar_select %p173, %s22, 0
          %s175 = smul.addr %s174, 8
          %s176 = scalar_lea.vmem %s0, %s175
        $region16: #{_forward.1} parent=11 // pred_fallthru
          _
        // Predicated region
        $region17: #{_forward.1} parent=11 // pred_check
          %p177 = pneg %p77
        $region18: #{_forward.1} parent=11 // pred_check_branch
          %179 = sbr.rel (%p177) target = $region20
        $region19: #{_forward.1} parent=11 // pred_region
          %p180 = scmp.lt.s32.totalorder %s22, 0
          %s181 = scalar_select %p180, %s22, 0
          %s182 = smul.addr %s181, 3
          %s183 = smul.addr %s182, 8
          %s184 = scalar_lea.vmem %s1, %s183
        $region20: #{_forward.1} parent=11 // pred_fallthru
          _
      $region12: #{_forward.1} parent=5 // pred_fallthru
        _
      %p185 = scmp.lt.s32.totalorder %s13, 2
      // Predicated region
      $region21: #{_forward.1} parent=5 // pred_check
        %p186 = pneg %p185
      $region22: #{_forward.1} parent=5 // pred_check_branch
        %188 = sbr.rel (%p186) target = $region24
      $region23: #{_forward.1} parent=5 // pred_region
        // Predicated region
        $region25: #{_forward.1} parent=23 // pred_check
          %p189 = pneg %p97
        $region26: #{_forward.1} parent=23 // pred_check_branch
          %191 = sbr.rel (%p189) target = $region28
        $region27: #{_forward.1} parent=23 // pred_region
          %s192 = sand.u32 %s87, 1
          %s193 = scalar_lea.sflag [#allocation4], %s192
          %s194 = sand.u32 %s87, 1
          %s195 = smul.addr %s194, 384
          %s196 = scalar_lea.vmem [#allocation3], %s195
          %s198 = ssub.s32 6144, 6144
          %199 = vsyncadd %s193, %s198
          %s200 = smul.addr %s21, 48
          %s201 = smul.addr %s200, 128
          %s202 = scalar_lea.hbm %s2, %s201
          %s203 = sshll.u32 %s196, 4
          %s204 = int_to_ptr.vmem [resolvable:$true] %s203
          %209 = dma.hbm_to_vmem [thread:$0]  %s202, 6144, %s204, %s193, 128, 128, 8
        $region28: #{_forward.1} parent=23 // pred_fallthru
          _
        // Predicated region
        $region29: #{_forward.1} parent=23 // pred_check
          %p210 = pneg %p123
        $region30: #{_forward.1} parent=23 // pred_check_branch
          %212 = sbr.rel (%p210) target = $region32
        $region31: #{_forward.1} parent=23 // pred_region
          %p213 = scmp.lt.s32.totalorder %s21, 1
          %s214 = scalar_select %p213, %s21, 1
          %s215 = scalar_lea.vmem %s3, %s214
        $region32: #{_forward.1} parent=23 // pred_fallthru
          _
      $region24: #{_forward.1} parent=5 // pred_fallthru
        _
      %p216 = scmp.le.s32.totalorder 1, %s13
      %p217 = scmp.lt.s32.totalorder %s13, 3
      %p218 = pnand %p216, %p217
      %p219 = pneg %p218
      // Predicated region
      $region33: #{_forward.1} parent=5 // pred_check
        _
      $region34: #{_forward.1} parent=5 // pred_check_branch
        %221 = sbr.rel (%p218) target = $region36
      $region35: #{_forward.1} parent=5 // pred_region
        %s222 = ssub.s32 %s13, 1
        %s223 = sand.u32 %s90, 1
        %s224 = scalar_lea.sflag [#allocation4], %s223
        %s225 = sand.u32 %s90, 1
        %s226 = smul.addr %s225, 384
        %s227 = scalar_lea.vmem [#allocation3], %s226
        // Predicated region
        $region37: #{_forward.1} parent=35 // pred_check
          %p228 = pneg %p103
        $region38: #{_forward.1} parent=35 // pred_check_branch
          %230 = sbr.rel (%p228) target = $region40
        $region39: #{_forward.1} parent=35 // pred_region
          %231 = dma.done %s224, 6144
        $region40: #{_forward.1} parent=35 // pred_fallthru
          _
        %p232 = scmp.lt.s32.totalorder %s22, 0
        %s233 = scalar_select %p232, %s22, 0
        %s234 = smul.addr %s233, 8
        %s235 = scalar_lea.vmem %s0, %s234
        %p236 = pneg %p51
        %p237 = pneg %p48
        %p238 = scmp.lt.s32.totalorder %s22, 0
        %s239 = scalar_select %p238, %s22, 0
        %s240 = smul.addr %s239, 3
        %s241 = smul.addr %s240, 8
        %s242 = scalar_lea.vmem %s1, %s241
        %p243 = pneg %p77
        %p244 = pneg %p74
        %s245 = sand.u32 %s90, 1
        %s246 = scalar_lea.sflag [#allocation4], %s245
        %s247 = sand.u32 %s90, 1
        %s248 = smul.addr %s247, 384
        %s249 = scalar_lea.vmem [#allocation3], %s248
        %p250 = pneg %p103
        %p251 = pneg %p100
        %p252 = scmp.lt.s32.totalorder %s23, 1
        %s253 = scalar_select %p252, %s23, 1
        %s254 = scalar_lea.vmem %s3, %s253
        %p255 = pneg %p129
        %p256 = pneg %p126
        %p257 = pneg %p155
        %p258 = pneg %p152
        %p259 = scmp.lt.s32.totalorder %s22, 0
        %s260 = scalar_select %p259, %s22, 0
        %s261 = smul.addr %s260, 8
        %s262 = scalar_lea.vmem %s4, %s261
        %p263 = scmp.lt.s32.totalorder %s22, 0
        %s264 = scalar_select %p263, %s22, 0
        %s265 = smul.addr %s264, 8
        %s266 = scalar_lea.vmem %s0, %s265
        %p267 = scmp.lt.s32.totalorder %s22, 0
        %s268 = scalar_select %p267, %s22, 0
        %s269 = smul.addr %s268, 3
        %s270 = smul.addr %s269, 8
        %s271 = scalar_lea.vmem %s1, %s270
        %p272 = scmp.lt.s32.totalorder %s23, 1
        %s273 = scalar_select %p272, %s23, 1
        %s274 = scalar_lea.vmem %s3, %s273
        %p275 = scmp.lt.s32.totalorder %s22, 0
        %s276 = scalar_select %p275, %s22, 0
        %s277 = smul.addr %s276, 8
        %s278 = scalar_lea.vmem %s4, %s277
        %p279 = scmp.eq.s32.totalorder %s23, 0
        // Predicated region
        $region41: #{_forward.1} parent=35 // pred_check
          %p280 = pneg %p279
        $region42: #{_forward.1} parent=35 // pred_check_branch
          %282 = sbr.rel (%p280) target = $region44
        $region43: #{_forward.1} parent=35 // pred_region
          %v283 = vld [vmem:[%s271] sm:$0xff]
          %v284 = vld [vmem:[%s271 + $0x8] sm:$0xff]
          %v285 = vld [vmem:[%s271 + $0x10] sm:$0xff]
          %286 = vst [vmem:[#allocation2] sm:$0xff] %v283
          %287 = vst [vmem:[#allocation2 + $0x8] sm:$0xff] %v284
          %288 = vst [vmem:[#allocation2 + $0x10] sm:$0xff] %v285
          %v289 = vld [vmem:[%s266] sm:$0xff]
          %290 = vst [vmem:[%s278] sm:$0xff] %v289
        $region44: #{_forward.1} parent=35 // pred_fallthru
          _
        %v291 = vld [vmem:[%s227] sm:$0xff]
        %v292 = vld [vmem:[%s227 + $0x8] sm:$0xff]
        %v293 = vld [vmem:[%s227 + $0x10] sm:$0xff]
        %v294 = vld [vmem:[%s227 + $0x18] sm:$0xff]
        %v295 = vld [vmem:[%s227 + $0x20] sm:$0xff]
        %v296 = vld [vmem:[%s227 + $0x28] sm:$0xff]
        %v297 = vld [vmem:[%s227 + $0x30] sm:$0xff]
        %v298 = vld [vmem:[%s227 + $0x38] sm:$0xff]
        %v299 = vld [vmem:[%s227 + $0x40] sm:$0xff]
        %v300 = vld [vmem:[%s227 + $0x48] sm:$0xff]
        %v301 = vld [vmem:[%s227 + $0x50] sm:$0xff]
        %v302 = vld [vmem:[%s227 + $0x58] sm:$0xff]
        %v303 = vld [vmem:[%s227 + $0x60] sm:$0xff]
        %v304 = vld [vmem:[%s227 + $0x68] sm:$0xff]
        %v305 = vld [vmem:[%s227 + $0x70] sm:$0xff]
        %v306 = vld [vmem:[%s227 + $0x78] sm:$0xff]
        %v307 = vld [vmem:[%s227 + $0x80] sm:$0xff]
        %v308 = vld [vmem:[%s227 + $0x88] sm:$0xff]
        %v309 = vld [vmem:[%s227 + $0x90] sm:$0xff]
        %v310 = vld [vmem:[%s227 + $0x98] sm:$0xff]
        %v311 = vld [vmem:[%s227 + $0xa0] sm:$0xff]
        %v312 = vld [vmem:[%s227 + $0xa8] sm:$0xff]
        %v313 = vld [vmem:[%s227 + $0xb0] sm:$0xff]
        %v314 = vld [vmem:[%s227 + $0xb8] sm:$0xff]
        %v315 = vld [vmem:[%s227 + $0xc0] sm:$0xff]
        %v316 = vld [vmem:[%s227 + $0xc8] sm:$0xff]
        %v317 = vld [vmem:[%s227 + $0xd0] sm:$0xff]
        %v318 = vld [vmem:[%s227 + $0xd8] sm:$0xff]
        %v319 = vld [vmem:[%s227 + $0xe0] sm:$0xff]
        %v320 = vld [vmem:[%s227 + $0xe8] sm:$0xff]
        %v321 = vld [vmem:[%s227 + $0xf0] sm:$0xff]
        %v322 = vld [vmem:[%s227 + $0xf8] sm:$0xff]
        %v323 = vld [vmem:[%s227 + $0x100] sm:$0xff]
        %v324 = vld [vmem:[%s227 + $0x108] sm:$0xff]
        %v325 = vld [vmem:[%s227 + $0x110] sm:$0xff]
        %v326 = vld [vmem:[%s227 + $0x118] sm:$0xff]
        %v327 = vld [vmem:[%s227 + $0x120] sm:$0xff]
        %v328 = vld [vmem:[%s227 + $0x128] sm:$0xff]
        %v329 = vld [vmem:[%s227 + $0x130] sm:$0xff]
        %v330 = vld [vmem:[%s227 + $0x138] sm:$0xff]
        %v331 = vld [vmem:[%s227 + $0x140] sm:$0xff]
        %v332 = vld [vmem:[%s227 + $0x148] sm:$0xff]
        %v333 = vld [vmem:[%s227 + $0x150] sm:$0xff]
        %v334 = vld [vmem:[%s227 + $0x158] sm:$0xff]
        %v335 = vld [vmem:[%s227 + $0x160] sm:$0xff]
        %v336 = vld [vmem:[%s227 + $0x168] sm:$0xff]
        %v337 = vld [vmem:[%s227 + $0x170] sm:$0xff]
        %v338 = vld [vmem:[%s227 + $0x178] sm:$0xff]
        %v339 = vld [vmem:[%s274] sm:$0x1]
        %v340 = vld [vmem:[#allocation2] sm:$0xff]
        %v341 = vld [vmem:[#allocation2 + $0x8] sm:$0xff]
        %v342 = vld [vmem:[#allocation2 + $0x10] sm:$0xff]
        %v344 = vlaneseq
        %v345 = vshrl.u32 %v344, 7
        %v346 = vsub.s32 0, %v345
        %v347 = vrot.slane %v339, %v346
        %349 = vmatprep.subr.mxu0 0.0
        %350 = vmatpush1.msra.mxu0 %v291
        %351 = vmatprep.subr.mxu0 0.0
        %352 = vmatpush1.msra.mxu0 %v292
        %353 = vmatprep.subr.mxu0 0.0
        %354 = vmatpush1.msra.mxu0 %v293
        %355 = vmatprep.subr.mxu0 0.0
        %356 = vmatpush1.msra.mxu0 %v294
        %357 = vmatprep.subr.mxu0 0.0
        %358 = vmatpush1.msra.mxu0 %v295
        %359 = vmatprep.subr.mxu0 0.0
        %360 = vmatpush1.msra.mxu0 %v296
        %361 = vmatprep.subr.mxu0 0.0
        %362 = vmatpush1.msra.mxu0 %v297
        %363 = vmatprep.subr.mxu0 0.0
        %364 = vmatpush1.msra.mxu0 %v298
        %365 = vmatprep.subr.mxu0 0.0
        %366 = vmatpush1.msra.mxu0 %v299
        %367 = vmatprep.subr.mxu0 0.0
        %368 = vmatpush1.msra.mxu0 %v300
        %369 = vmatprep.subr.mxu0 0.0
        %370 = vmatpush1.msra.mxu0 %v301
        %371 = vmatprep.subr.mxu0 0.0
        %372 = vmatpush1.msra.mxu0 %v302
        %373 = vmatprep.subr.mxu0 0.0
        %374 = vmatpush1.msra.mxu0 %v303
        %375 = vmatprep.subr.mxu0 0.0
        %376 = vmatpush1.msra.mxu0 %v304
        %377 = vmatprep.subr.mxu0 0.0
        %378 = vmatpush1.msra.mxu0 %v305
        %379 = vmatprep.subr.mxu0 0.0
        %380 = vmatpush1.msra.mxu0 %v306
        %381 = vmatprep.subr.mxu0 0.0
        %382 = vmatpush1.msra.mxu0 %v307
        %383 = vmatprep.subr.mxu0 0.0
        %384 = vmatpush1.msra.mxu0 %v308
        %385 = vmatprep.subr.mxu0 0.0
        %386 = vmatpush1.msra.mxu0 %v309
        %387 = vmatprep.subr.mxu0 0.0
        %388 = vmatpush1.msra.mxu0 %v310
        %389 = vmatprep.subr.mxu0 0.0
        %390 = vmatpush1.msra.mxu0 %v311
        %391 = vmatprep.subr.mxu0 0.0
        %392 = vmatpush1.msra.mxu0 %v312
        %393 = vmatprep.subr.mxu0 0.0
        %394 = vmatpush1.msra.mxu0 %v313
        %395 = vmatprep.subr.mxu0 0.0
        %396 = vmatpush1.msra.mxu0 %v314
        %397 = vmatprep.subr.mxu0 0.0
        %398 = vmatpush1.msra.mxu0 %v315
        %399 = vmatprep.subr.mxu0 0.0
        %400 = vmatpush1.msra.mxu0 %v316
        %401 = vmatprep.subr.mxu0 0.0
        %402 = vmatpush1.msra.mxu0 %v317
        %403 = vmatprep.subr.mxu0 0.0
        %404 = vmatpush1.msra.mxu0 %v318
        %405 = vmatprep.subr.mxu0 0.0
        %406 = vmatpush1.msra.mxu0 %v319
        %407 = vmatprep.subr.mxu0 0.0
        %408 = vmatpush1.msra.mxu0 %v320
        %409 = vmatprep.subr.mxu0 0.0
        %410 = vmatpush1.msra.mxu0 %v321
        %411 = vmatprep.subr.mxu0 0.0
        %412 = vmatpush1.msra.mxu0 %v322
        %413 = vmatprep.mubr.f32.mxu0 %v341
        %414 = vmatmul.mubr.f32.gmra.mrb[0].mxu0 %v340
        %v415 = vpop.f32.mrb[0].mxu0
        %v416 = vadd.f32 %v347, %v415
        %v417 = vpop.f32.mrb[0].mxu0
        %418 = vdwg.mxu0
        %419 = vmatprep.subr.mxu0 0.0
        %420 = vmatpush1.msra.mxu0 %v323
        %421 = vmatprep.subr.mxu0 0.0
        %422 = vmatpush1.msra.mxu0 %v324
        %423 = vmatprep.subr.mxu0 0.0
        %424 = vmatpush1.msra.mxu0 %v325
        %425 = vmatprep.subr.mxu0 0.0
        %426 = vmatpush1.msra.mxu0 %v326
        %427 = vmatprep.subr.mxu0 0.0
        %428 = vmatpush1.msra.mxu0 %v327
        %429 = vmatprep.subr.mxu0 0.0
        %430 = vmatpush1.msra.mxu0 %v328
        %431 = vmatprep.subr.mxu0 0.0
        %432 = vmatpush1.msra.mxu0 %v329
        %433 = vmatprep.subr.mxu0 0.0
        %434 = vmatpush1.msra.mxu0 %v330
        %435 = vmatprep.subr.mxu0 0.0
        %436 = vmatpush1.msra.mxu0 %v331
        %437 = vmatprep.subr.mxu0 0.0
        %438 = vmatpush1.msra.mxu0 %v332
        %439 = vmatprep.subr.mxu0 0.0
        %440 = vmatpush1.msra.mxu0 %v333
        %441 = vmatprep.subr.mxu0 0.0
        %442 = vmatpush1.msra.mxu0 %v334
        %443 = vmatprep.subr.mxu0 0.0
        %444 = vmatpush1.msra.mxu0 %v335
        %445 = vmatprep.subr.mxu0 0.0
        %446 = vmatpush1.msra.mxu0 %v336
        %447 = vmatprep.subr.mxu0 0.0
        %448 = vmatpush1.msra.mxu0 %v337
        %449 = vmatprep.subr.mxu0 0.0
        %450 = vmatpush1.msra.mxu0 %v338
        %451 = vmatprep.subr.mxu0 0.0
        %452 = vmatpush1.msra.mxu0 0.0
        %453 = vmatprep.subr.mxu0 0.0
        %454 = vmatpush1.msra.mxu0 0.0
        %455 = vmatprep.subr.mxu0 0.0
        %456 = vmatpush1.msra.mxu0 0.0
        %457 = vmatprep.subr.mxu0 0.0
        %458 = vmatpush1.msra.mxu0 0.0
        %459 = vmatprep.subr.mxu0 0.0
        %460 = vmatpush1.msra.mxu0 0.0
        %461 = vmatprep.subr.mxu0 0.0
        %462 = vmatpush1.msra.mxu0 0.0
        %463 = vmatprep.subr.mxu0 0.0
        %464 = vmatpush1.msra.mxu0 0.0
        %465 = vmatprep.subr.mxu0 0.0
        %466 = vmatpush1.msra.mxu0 0.0
        %467 = vmatprep.subr.mxu0 0.0
        %468 = vmatpush1.msra.mxu0 0.0
        %469 = vmatprep.subr.mxu0 0.0
        %470 = vmatpush1.msra.mxu0 0.0
        %471 = vmatprep.subr.mxu0 0.0
        %472 = vmatpush1.msra.mxu0 0.0
        %473 = vmatprep.subr.mxu0 0.0
        %474 = vmatpush1.msra.mxu0 0.0
        %475 = vmatprep.subr.mxu0 0.0
        %476 = vmatpush1.msra.mxu0 0.0
        %477 = vmatprep.subr.mxu0 0.0
        %478 = vmatpush1.msra.mxu0 0.0
        %479 = vmatprep.subr.mxu0 0.0
        %480 = vmatpush1.msra.mxu0 0.0
        %481 = vmatprep.subr.mxu0 0.0
        %482 = vmatpush1.msra.mxu0 0.0
        %483 = vmatprep.mubr.f32.mxu0 0.0
        %484 = vmatmul.mubr.f32.gmra.mrb[0].mxu0 %v342
        %v485 = vpop.f32.mrb[0].mxu0
        %v486 = vadd.f32 %v416, %v485
        %v487 = vpop.f32.mrb[0].mxu0
        %488 = vdwg.mxu0
        %v489 = vld [vmem:[%s278] sm:$0xff]
        %v490 = vmul.f32 %v486, %v489
        %491 = vadd.xlane.f32.xlu0 %v490
        %v492 = vpop.xlane.xlu0 %491
        %v493 = vmul.f32 %v486, %v486
        %494 = vadd.xlane.f32.xlu0 %v493
        %v495 = vpop.xlane.xlu0 %494
        %v496 = vmul.f32 %v492, 2.0
        %v497 = vrcp.pop %v495
        %v498 = vmul.f32 %v496, %v497
        %v499 = vmul.f32 %v486, %v498
        %v500 = vsub.f32 %v489, %v499
        %501 = vst [vmem:[%s278] sm:$0xff] %v500
        %p502 = scmp.lt.s32.totalorder %s23, 1
        // Predicated region
        $region45: #{_forward.1} parent=35 // pred_check
          %p503 = pneg %p502
        $region46: #{_forward.1} parent=35 // pred_check_branch
          %505 = sbr.rel (%p503) target = $region48
        $region47: #{_forward.1} parent=35 // pred_region
          %506 = vst [vmem:[#allocation2] sm:$0xff] %v486
        $region48: #{_forward.1} parent=35 // pred_fallthru
          _
        %p507 = scmp.lt.s32.totalorder %s22, 0
        %s508 = scalar_select %p507, %s22, 0
        %s509 = smul.addr %s508, 8
        %s510 = scalar_lea.vmem %s4, %s509
        // Predicated region
        $region49: #{_forward.1} parent=35 // pred_check
          %p511 = pneg %p152
        $region50: #{_forward.1} parent=35 // pred_check_branch
          %513 = sbr.rel (%p511) target = $region52
        $region51: #{_forward.1} parent=35 // pred_region
          _
        $region52: #{_forward.1} parent=35 // pred_fallthru
          _
        // Predicated region
        $region53: #{_forward.1} parent=35 // pred_check
          %p514 = pneg %p152
        $region54: #{_forward.1} parent=35 // pred_check_branch
          %516 = sbr.rel (%p514) target = $region56
        $region55: #{_forward.1} parent=35 // pred_region
          %p517 = scmp.lt.s32.totalorder %s22, 0
          %s518 = scalar_select %p517, %s22, 0
          %s519 = smul.addr %s518, 8
          %s520 = scalar_lea.vmem %s4, %s519
        $region56: #{_forward.1} parent=35 // pred_fallthru
          _
      $region36: #{_forward.1} parent=5 // pred_fallthru
        _
      %p521 = scmp.le.s32.totalorder 2, %s13
      // Predicated region
      $region57: #{_forward.1} parent=5 // pred_check
        %p522 = pneg %p521
      $region58: #{_forward.1} parent=5 // pred_check_branch
        %524 = sbr.rel (%p522) target = $region60
      $region59: #{_forward.1} parent=5 // pred_region
        %s525 = ssub.s32 %s13, 2
      $region60: #{_forward.1} parent=5 // pred_fallthru
        _
    $region6: #{_forward.1} parent=1 // loop_footer
      %s17 = sadd.s32 1, %s13
    $region7: #{_forward.1} parent=1 // loop_footer_branch
      %12 = sbr.rel target = $region3
    $region8: #{_forward.1} parent=1 // loop_exit
      _
    %526 = vsyncpa [#allocation4], 1
    %s527 = scalar_lea.sflag [#allocation4], 1
    %528 = vsyncpa %s527, 1

</llo_original>
